<compile_context>
chip_gen: v6e
topology: v6e:2x2x1
jax: 0.10.0
libtpu: 0.0.40
codegen_flags: <defaults>
</compile_context>

<pallas_src>
import jax
import jax.numpy as jnp
from jax import lax
from jax.experimental import pallas as pl
from jax.experimental.pallas import tpu as pltpu

LANES = 128
TARGET_BLOCK_BYTES = 4 << 20      # 4 MiB per input block per grid step
CHUNK_ROWS = 256                  # rows per in-register accumulation chunk
SMALL_FASTPATH_ELEMS = 1 << 15    # below this, a fused XLA reduction wins
VMEM_LIMIT_BYTES = 48 << 20       # > 16 MiB double-buffered inputs; < 64 MiB (v7x per-TC)


def _round_up(x, m):
    return ((x + m - 1) // m) * m


def _sublane_packing(dtype) -> int:
    return {4: 8, 2: 16, 1: 32}.get(jnp.dtype(dtype).itemsize, 8)


def _num_tensorcores() -> int:
    """2 TensorCores per chip only on v7x; v5e/v6e are single-TC."""
    try:
        kind = jax.devices()[0].device_kind.lower()
    except Exception:
        return 1
    return 2 if ("v7" in kind or "7x" in kind) else 1


def _make_sse_kernel(tile_rows: int, chunk_rows: int, rows: int, steps: int,
                     needs_mask: bool, two_cores: bool):
    """SSE accumulation kernel. out_ref is a resident (1,8,128) f32 accumulator
    per core; the last grid axis is the reduction axis."""
    n_chunks = tile_rows // chunk_rows
    unroll = min(8, n_chunks)

    def kernel(yhat_ref, y_ref, out_ref):
        if two_cores:
            c = pl.program_id(0)
            i = pl.program_id(1)
            tile_idx = c * steps + i
        else:
            i = pl.program_id(0)
            tile_idx = i

        @pl.when(i == 0)
        def _():
            out_ref[...] = jnp.zeros_like(out_ref)

        row_start = tile_idx * tile_rows

        def accumulate(masked):
            # Chunked accumulation: bounded live ranges, everything stays in
            # vregs; the single cross-lane reduce is deferred to the wrapper.
            def body(k, acc):
                start = pl.multiple_of(k * chunk_rows, chunk_rows)
                yh = yhat_ref[pl.ds(start, chunk_rows), :].astype(jnp.float32)
                yy = y_ref[pl.ds(start, chunk_rows), :].astype(jnp.float32)
                d = yh - yy
                sq = d * d
                if masked:
                    ridx = row_start + start + lax.broadcasted_iota(
                        jnp.int32, (chunk_rows, LANES), 0)
                    # select (not multiply): garbage rows past `rows` may be
                    # NaN/Inf and must not propagate.
                    sq = jnp.where(ridx < rows, sq, jnp.float32(0.0))
                return acc + jnp.sum(
                    sq.reshape(chunk_rows // 8, 8, LANES), axis=0)

            acc = lax.fori_loop(0, n_chunks, body,
                                jnp.zeros((8, LANES), jnp.float32),
                                unroll=unroll)
            out_ref[0] += acc

        if not needs_mask:
            # Common case: every tile is full and valid -> pure sub/mul/add.
            accumulate(False)
        else:
            is_full = (row_start + tile_rows) <= rows

            @pl.when(is_full)
            def _():
                accumulate(False)

            # Partial last tile: mask rows past the real array. Overflow tiles
            # (clamped duplicates from the 2-core split) have row_start >= rows
            # and skip accumulation entirely.
            @pl.when(jnp.logical_and(jnp.logical_not(is_full), row_start < rows))
            def _():
                accumulate(True)

    return kernel


def rmse_loss(yhat: jax.Array, y: jax.Array, *, force_pallas: bool = False) -> jax.Array:
    """sqrt(mean((yhat - y)**2)) over all elements. Returns scalar float32."""
    assert yhat.shape == y.shape, "RMSELoss expects matching shapes"
    n_total = yhat.size

    # Small-input fast path: kernel launch + grid setup would dominate.
    if (not force_pallas) and n_total <= SMALL_FASTPATH_ELEMS:
        d = yhat.astype(jnp.float32).reshape(-1) - y.astype(jnp.float32).reshape(-1)
        return jnp.sqrt(jnp.mean(d * d))

    flat_yhat = yhat.reshape(-1)
    flat_y = y.reshape(-1)
    if n_total % LANES != 0:
        # Tiny (<128 elem) zero-pad; zeros contribute 0 to the SSE and we
        # divide by the true element count.
        pad = _round_up(n_total, LANES) - n_total
        flat_yhat = jnp.pad(flat_yhat, (0, pad))
        flat_y = jnp.pad(flat_y, (0, pad))
    rows = flat_yhat.size // LANES
    yhat_2d = flat_yhat.reshape(rows, LANES)
    y_2d = flat_y.reshape(rows, LANES)

    itemsize_a = jnp.dtype(yhat.dtype).itemsize
    itemsize_b = jnp.dtype(y.dtype).itemsize
    max_itemsize = max(itemsize_a, itemsize_b)
    sublane = max(_sublane_packing(yhat.dtype), _sublane_packing(y.dtype))

    # Chunk of rows processed per inner-loop iteration (multiple of packing).
    chunk_rows = min(CHUNK_ROWS, _round_up(rows, sublane))
    # ~4 MiB per input block (8192 rows f32 / 16384 bf16 / 32768 int8),
    # rounded so tile_rows is always a multiple of chunk_rows.
    target_rows = max(chunk_rows, TARGET_BLOCK_BYTES // (LANES * max_itemsize))
    tile_rows = min(target_rows, _round_up(rows, chunk_rows))
    total_tiles = pl.cdiv(rows, tile_rows)

    num_cores = _num_tensorcores()
    if total_tiles < 2:
        num_cores = 1
    steps = pl.cdiv(total_tiles, num_cores)
    needs_mask = (total_tiles * tile_rows != rows) or (num_cores * steps != total_tiles)
    two_cores = num_cores == 2

    if two_cores:
        grid = (num_cores, steps)

        def in_map(c, i):
            # Clamp overflow tiles (from rounding total_tiles up to
            # num_cores*steps) onto the last valid tile; the in-kernel gate
            # skips their accumulation. Keeps every DMA block index in bounds.
            return (jnp.minimum(c * steps + i, total_tiles - 1), 0)

        out_map = lambda c, i: (c, 0, 0)
        core_par = getattr(pltpu, "CORE_PARALLEL", None)
        arb = getattr(pltpu, "ARBITRARY", "arbitrary")
        dim_sem = (core_par, arb) if core_par is not None else ("parallel", "arbitrary")
    else:
        grid = (steps,)
        in_map = lambda i: (i, 0)
        out_map = lambda i: (0, 0, 0)
        dim_sem = ("arbitrary",)

    partials = pl.pallas_call(
        _make_sse_kernel(tile_rows, chunk_rows, rows, steps, needs_mask, two_cores),
        out_shape=jax.ShapeDtypeStruct((num_cores, 8, LANES), jnp.float32),
        grid_spec=pltpu.PrefetchScalarGridSpec(
            num_scalar_prefetch=0,
            grid=grid,
            in_specs=[
                pl.BlockSpec((tile_rows, LANES), in_map),
                pl.BlockSpec((tile_rows, LANES), in_map),
            ],
            out_specs=pl.BlockSpec((1, 8, LANES), out_map),
        ),
        compiler_params=pltpu.CompilerParams(
            dimension_semantics=dim_sem,
            vmem_limit_bytes=VMEM_LIMIT_BYTES,
        ),
        cost_estimate=pl.CostEstimate(
            flops=3 * n_total,
            transcendentals=0,
            bytes_accessed=n_total * (itemsize_a + itemsize_b)
                           + num_cores * 8 * LANES * 4,
        ),
    )(yhat_2d, y_2d)

    # Tiny epilogue: one cross-lane reduce over (num_cores, 8, 128) partials.
    sse = jnp.sum(partials)
    return jnp.sqrt(sse / jnp.float32(n_total))


if __name__ == "__main__":
    key = jax.random.PRNGKey(0)
    k1, k2, k3, k4 = jax.random.split(key, 4)

    # Small shape consistent with a typical regression output, e.g. (B, C, H, W).
    yhat = jax.random.normal(k1, (2, 4, 16, 16), dtype=jnp.float32)
    y = jax.random.normal(k2, (2, 4, 16, 16), dtype=jnp.float32)

    # Force the Pallas path to exercise the kernel even at this small size.
    out_pallas = jax.block_until_ready(rmse_loss(yhat, y, force_pallas=True))
    ref = jnp.sqrt(jnp.mean((yhat - y) ** 2))
    assert jnp.allclose(out_pallas, ref, rtol=1e-5, atol=1e-6), (out_pallas, ref)

    # Default path (small-input jnp fast path) must agree too.
    out_fast = jax.block_until_ready(rmse_loss(yhat, y))
    assert jnp.allclose(out_fast, ref, rtol=1e-5, atol=1e-6), (out_fast, ref)

    # Larger check exercising multi-tile accumulation, the chunked inner loop,
    # and the gated partial-tile mask (rows = 16640 -> 3 tiles, last partial).
    yhat_l = jax.random.normal(k3, (16, 8, 128, 130), dtype=jnp.float32)
    y_l = jax.random.normal(k4, (16, 8, 128, 130), dtype=jnp.float32)
    out_l = jax.block_until_ready(rmse_loss(yhat_l, y_l))
    ref_l = jnp.sqrt(jnp.mean((yhat_l - y_l) ** 2))
    assert jnp.allclose(out_l, ref_l, rtol=1e-4, atol=1e-6), (out_l, ref_l)

    print("KERNEL_OK")
</pallas_src>

<mosaic_0001>
module attributes {stable_mosaic.version = 11 : i64} {
  func.func @kernel(%arg0: i32, %arg1: memref<16x128xf32, #tpu.memory_space<vmem>>, %arg2: memref<16x128xf32, #tpu.memory_space<vmem>>, %arg3: memref<1x8x128xf32, #tpu.memory_space<vmem>>) attributes {dimension_semantics = [#tpu.dimension_semantics<arbitrary>], iteration_bounds = array<i64: 1>, scalar_prefetch = 0 : i64, scratch_operands = 0 : i64, tpu.core_type = #tpu.core_type<tc>, window_params = [{transform_indices = @transform_0, window_bounds = array<i64: 16, 128>}, {transform_indices = @transform_1, window_bounds = array<i64: 16, 128>}, {pipeline_mode = #tpu.pipeline_mode<synchronous>, transform_indices = @transform_2, window_bounds = array<i64: 1, 8, 128>}]} {
    %c0_i32 = arith.constant 0 : i32
    %0 = arith.cmpi eq, %arg0, %c0_i32 : i32
    %1 = arith.extui %0 : i1 to i32
    %c0_i32_0 = arith.constant 0 : i32
    %2 = arith.cmpi ne, %1, %c0_i32_0 : i32
    scf.if %2 {
      %cst_10 = arith.constant 0.000000e+00 : f32
      %21 = vector.broadcast %cst_10 : f32 to vector<1x8x128xf32>
      %c0_11 = arith.constant 0 : index
      %c0_12 = arith.constant 0 : index
      %c0_13 = arith.constant 0 : index
      %22 = vector.load %arg3[%c0_11, %c0_12, %c0_13] : memref<1x8x128xf32, #tpu.memory_space<vmem>>, vector<1x8x128xf32>
      tpu.vector_store %arg3[%c0_11, %c0_12, %c0_13], %21 {strides = array<i32>} : memref<1x8x128xf32, #tpu.memory_space<vmem>>, vector<1x8x128xf32>,
    } else {
    }
    %cst = arith.constant 0.000000e+00 : f32
    %3 = vector.broadcast %cst : f32 to vector<8x128xf32>
    %c0_i32_1 = arith.constant 0 : i32
    %c16_i32 = arith.constant 16 : i32
    %4 = arith.muli %c0_i32_1, %c16_i32 : i32
    %5 = tpu.assume_multiple %4, 16 : i32
    %6 = arith.index_cast %5 : i32 to index
    %c0 = arith.constant 0 : index
    %7 = vector.load %arg1[%6, %c0] : memref<16x128xf32, #tpu.memory_space<vmem>>, vector<16x128xf32>
    %8 = arith.index_cast %5 : i32 to index
    %c0_2 = arith.constant 0 : index
    %9 = vector.load %arg2[%8, %c0_2] : memref<16x128xf32, #tpu.memory_space<vmem>>, vector<16x128xf32>
    %10 = arith.subf %7, %9 : vector<16x128xf32>
    %11 = arith.mulf %10, %10 : vector<16x128xf32>
    %12 = vector.shape_cast %11 : vector<16x128xf32> to vector<2x8x128xf32>
    %cst_3 = arith.constant dense<0.000000e+00> : vector<8x128xf32>
    %13 = vector.multi_reduction <add>, %12, %cst_3 [0] : vector<2x8x128xf32> to vector<8x128xf32>
    %14 = arith.addf %3, %13 : vector<8x128xf32>
    %c1_i32 = arith.constant 1 : i32
    %c0_4 = arith.constant 0 : index
    %c0_5 = arith.constant 0 : index
    %c0_6 = arith.constant 0 : index
    %15 = vector.load %arg3[%c0_4, %c0_5, %c0_6] : memref<1x8x128xf32, #tpu.memory_space<vmem>>, vector<1x8x128xf32>
    %16 = vector.shape_cast %15 : vector<1x8x128xf32> to vector<8x128xf32>
    %17 = arith.addf %16, %14 : vector<8x128xf32>
    %c0_7 = arith.constant 0 : index
    %c0_8 = arith.constant 0 : index
    %c0_9 = arith.constant 0 : index
    %18 = vector.load %arg3[%c0_7, %c0_8, %c0_9] : memref<1x8x128xf32, #tpu.memory_space<vmem>>, vector<1x8x128xf32>
    %19 = vector.shape_cast %18 : vector<1x8x128xf32> to vector<8x128xf32>
    %20 = vector.shape_cast %17 : vector<8x128xf32> to vector<1x8x128xf32>
    tpu.vector_store %arg3[%c0_7, %c0_8, %c0_9], %20 {strides = array<i32>} : memref<1x8x128xf32, #tpu.memory_space<vmem>>, vector<1x8x128xf32>,
    return
  }
  func.func @transform_0(%arg0: i32) -> (i32, i32) {
    %c0_i32 = arith.constant 0 : i32
    %c0_i32_0 = arith.constant 0 : i32
    return %arg0, %c0_i32 : i32, i32
  }
  func.func @transform_1(%arg0: i32) -> (i32, i32) {
    %c0_i32 = arith.constant 0 : i32
    %c0_i32_0 = arith.constant 0 : i32
    return %arg0, %c0_i32 : i32, i32
  }
  func.func @transform_2(%arg0: i32) -> (i32, i32, i32) {
    %c0_i32 = arith.constant 0 : i32
    %c0_i32_0 = arith.constant 0 : i32
    %c0_i32_1 = arith.constant 0 : i32
    %c0_i32_2 = arith.constant 0 : i32
    return %c0_i32, %c0_i32_0, %c0_i32_1 : i32, i32, i32
  }
}

</mosaic_0001>

<llo_original>
// kernel: tpu_custom_call.1
$region0: #{tpu_custom_call.1}
  #allocation0 [shape = 'u32[]', space=smem, size = 0x4, offset = 0x4, fixed_abs, tag = 'smem constant byte address 0x4 - core index']
  #allocation1 [shape = 'u32[144,128]{1,0:T(1,128)}', space=vmem, size = 0x12000, scoped, tag = 'internal scratch']
  %s0 = inlined_call_operand.hbm [shape: f32[16,128], index: 0, kind: input, shape index: {}]
  %s1 = inlined_call_operand.hbm [shape: f32[16,128], index: 1, kind: input, shape index: {}]
  %s2 = inlined_call_operand.hbm [shape: f32[1,8,128], index: 2, kind: output, shape index: {}]
  %s3 = sld [smem:[#allocation0]]
  $region30: #{tpu_custom_call.1} parent=0
    _
  %s5 = ssub.s32 1, %s3
  %s6 = scalar_select 0, %s5, %s3
  $region1: #{tpu_custom_call.1} parent=0
    #allocation2 [shape = 'u8[8192]{0}', space=vmem, size = 0x2000, scoped, tag = 'input window, operand 0, single buffered']
    #allocation3 [shape = 's32[1]{0}', space=sflag, size = 0x4, scoped, tag = 'scoped memory for tpu_custom_call.1']
    #allocation4 [shape = 's32[1]{0}', space=sflag, size = 0x4, scoped, tag = 'scoped memory for tpu_custom_call.1']
    #allocation5 [shape = 'u8[8192]{0}', space=vmem, size = 0x2000, scoped, tag = 'input window, operand 1, single buffered']
    #allocation6 [shape = 's32[1]{0}', space=sflag, size = 0x4, scoped, tag = 'scoped memory for tpu_custom_call.1']
    #allocation7 [shape = 'u8[4096]{0}', space=vmem, size = 0x1000, scoped, tag = 'output window, operand 0, single buffered']
    %7 = vsyncpa [#allocation3], 0
    %8 = vsyncpa [#allocation6], 0
    %9 = vsyncpa [#allocation4], 0
    // Predicated region
    $region2: #{tpu_custom_call.1} parent=1 // pred_check
      _
    $region3: #{tpu_custom_call.1} parent=1 // pred_check_branch
      %11 = sbr.rel (0) target = $region5
    $region4: #{tpu_custom_call.1} parent=1 // pred_region
      %s13 = ssub.s32 256, 256
      %14 = vsyncadd [#allocation3], %s13
      %s15 = sshll.u32 [#allocation2], 4
      %s16 = int_to_ptr.vmem [resolvable:$true] %s15
      %21 = dma.hbm_to_vmem [thread:$0]  %s0, 256, %s16, [#allocation3], 128, 128, 8
    $region5: #{tpu_custom_call.1} parent=1 // pred_fallthru
      _
    // Predicated region
    $region6: #{tpu_custom_call.1} parent=1 // pred_check
      _
    $region7: #{tpu_custom_call.1} parent=1 // pred_check_branch
      %23 = sbr.rel (0) target = $region9
    $region8: #{tpu_custom_call.1} parent=1 // pred_region
      %s25 = ssub.s32 256, 256
      %26 = vsyncadd [#allocation6], %s25
      %s27 = sshll.u32 [#allocation5], 4
      %s28 = int_to_ptr.vmem [resolvable:$true] %s27
      %33 = dma.hbm_to_vmem [thread:$0]  %s1, 256, %s28, [#allocation6], 128, 128, 8
    $region9: #{tpu_custom_call.1} parent=1 // pred_fallthru
      _
    // Predicated region
    $region10: #{tpu_custom_call.1} parent=1 // pred_check
      _
    $region11: #{tpu_custom_call.1} parent=1 // pred_check_branch
      %35 = sbr.rel (0) target = $region13
    $region12: #{tpu_custom_call.1} parent=1 // pred_region
      %36 = dma.done [#allocation3], 256
    $region13: #{tpu_custom_call.1} parent=1 // pred_fallthru
      _
    // Predicated region
    $region14: #{tpu_custom_call.1} parent=1 // pred_check
      _
    $region15: #{tpu_custom_call.1} parent=1 // pred_check_branch
      %38 = sbr.rel (0) target = $region17
    $region16: #{tpu_custom_call.1} parent=1 // pred_region
      %39 = dma.done [#allocation6], 256
    $region17: #{tpu_custom_call.1} parent=1 // pred_fallthru
      _
    %p40 = scmp.eq.s32.totalorder 0, 0
    // Predicated region
    $region18: #{tpu_custom_call.1} parent=1 // pred_check
      %p41 = pneg %p40
    $region19: #{tpu_custom_call.1} parent=1 // pred_check_branch
      %43 = sbr.rel (%p41) target = $region21
    $region20: #{tpu_custom_call.1} parent=1 // pred_region
      %44 = vst [vmem:[#allocation7] sm:$0xff] 0.0
    $region21: #{tpu_custom_call.1} parent=1 // pred_fallthru
      _
    %v45 = vld [vmem:[#allocation2] sm:$0xff]
    %v46 = vld [vmem:[#allocation2 + $0x8] sm:$0xff]
    %v47 = vld [vmem:[#allocation5] sm:$0xff]
    %v48 = vld [vmem:[#allocation5 + $0x8] sm:$0xff]
    %v49 = vsub.f32 %v45, %v47
    %v50 = vsub.f32 %v46, %v48
    %v51 = vmul.f32 %v49, %v49
    %v52 = vmul.f32 %v50, %v50
    %v53 = vadd.f32 %v51, %v52
    %v54 = vadd.f32 %v53, 0.0
    %v55 = vld [vmem:[#allocation7] sm:$0xff]
    %v56 = vadd.f32 %v55, %v54
    %57 = vst [vmem:[#allocation7] sm:$0xff] %v56
    // Predicated region
    $region22: #{tpu_custom_call.1} parent=1 // pred_check
      _
    $region23: #{tpu_custom_call.1} parent=1 // pred_check_branch
      %59 = sbr.rel (0) target = $region25
    $region24: #{tpu_custom_call.1} parent=1 // pred_region
      %s61 = ssub.s32 128, 128
      %62 = vsyncadd [#allocation4], %s61
      %s64 = sshll.u32 [#allocation7], 4
      %s65 = int_to_ptr.vmem [resolvable:$true] %s64
      %67 = dma.vmem_to_hbm [thread:$0]  %s65, 128, %s2, [#allocation4]
    $region25: #{tpu_custom_call.1} parent=1 // pred_fallthru
      _
    // Predicated region
    $region26: #{tpu_custom_call.1} parent=1 // pred_check
      _
    $region27: #{tpu_custom_call.1} parent=1 // pred_check_branch
      %69 = sbr.rel (0) target = $region29
    $region28: #{tpu_custom_call.1} parent=1 // pred_region
      %70 = dma.done [#allocation4], 128
    $region29: #{tpu_custom_call.1} parent=1 // pred_fallthru
      _
    %71 = vsyncpa [#allocation3], 1
    %72 = vsyncpa [#allocation6], 1
    %73 = vsyncpa [#allocation4], 1

</llo_original>
